<compile_context>
chip_gen: v5e
topology: v5e:2x2
jax: 0.10.0
libtpu: 0.0.40
codegen_flags: <defaults>
</compile_context>

<pallas_src>
import functools

import jax
import jax.numpy as jnp
from jax.experimental import pallas as pl
from jax.experimental.pallas import tpu as pltpu

LANES = 128
SUBLANES = 8                      # f32 vreg sublanes (accumulator granularity)
_DEFAULT_ROW_TILE = 8192          # (8192, 128) f32 block = 4 MiB per input
_SMALL_N_THRESHOLD = 256 * 1024   # below this, the XLA fusion beats any launch


def _round_up(a, b):
    return (a + b - 1) // b * b


def _sublane_multiple(dtype):
    """Packed minimum sublane multiple: 8 for f32, 16 for bf16, 32 for int8/fp8."""
    itemsize = jnp.dtype(dtype).itemsize
    return max(SUBLANES, SUBLANES * (4 // max(itemsize, 1)))


def _mse_reference(x, target):
    d = x.astype(jnp.float32) - target.astype(jnp.float32)
    return jnp.mean(d * d).astype(x.dtype)


def _mse_partial_kernel(x_ref, t_ref, o_ref, *, rows, row_tile, steps):
    """Accumulates a per-partition sum of squared differences into (1, 8, 128)."""
    p = pl.program_id(0)  # partition axis ("parallel"; megacore split)
    s = pl.program_id(1)  # reduction axis ("arbitrary")

    # Output block is resident across the reduction axis -> it is the accumulator.
    @pl.when(s == 0)
    def _():
        o_ref[...] = jnp.zeros_like(o_ref)

    # Logical (unclamped) block index; the index_map clamps the DMA for the
    # (at most one) duplicate block of the last partition.
    blk = p * steps + s
    row0 = blk * row_tile
    is_full = row0 + row_tile <= rows  # full, valid, non-duplicate block

    def _sum_sq(d):
        # (row_tile, 128) -> (row_tile//8, 8, 128): each group is one f32 vreg
        # tile, so the axis-0 reduction is pure element-wise VPU adds (no XLU).
        dd = (d * d).reshape(row_tile // SUBLANES, SUBLANES, LANES)
        return jnp.sum(dd, axis=0, keepdims=True)

    # Fast path: no masking at all (sub, mul, add). Runs on >95% of steps.
    @pl.when(is_full)
    def _():
        d = x_ref[...].astype(jnp.float32) - t_ref[...].astype(jnp.float32)
        o_ref[...] += _sum_sq(d)

    # Slow path: ragged boundary block or clamped duplicate block -> mask rows.
    @pl.when(jnp.logical_not(is_full))
    def _():
        row_idx = row0 + jax.lax.broadcasted_iota(jnp.int32, (row_tile, LANES), 0)
        valid = row_idx < rows
        d = x_ref[...].astype(jnp.float32) - t_ref[...].astype(jnp.float32)
        d = jnp.where(valid, d, 0.0)  # also squashes any garbage from the DMA overhang
        o_ref[...] += _sum_sq(d)


def _content_loss_pallas(x, target, *, row_tile=_DEFAULT_ROW_TILE):
    """Kernel path. Requires x.size % 128 == 0 (checked by the public wrapper)."""
    assert x.shape == target.shape, "x and target must have the same shape"
    n_true = int(x.size)
    assert n_true % LANES == 0, "kernel path requires element count % 128 == 0"

    # Metadata-only reshapes (row-major, contiguous): no HBM copies.
    rows = n_true // LANES
    x2 = x.reshape(rows, LANES)
    t2 = target.reshape(rows, LANES)

    # Block rows: multiple of the dtype's packed sublane minimum, never (much)
    # larger than the array.
    sub_mult = max(_sublane_multiple(x2.dtype), _sublane_multiple(t2.dtype))
    row_tile = max(sub_mult, min(_round_up(row_tile, sub_mult),
                                 _round_up(rows, sub_mult)))

    total_blocks = pl.cdiv(rows, row_tile)
    num_parts = 2 if total_blocks >= 2 else 1  # v7x: shard reduction over 2 TCs
    steps = pl.cdiv(total_blocks, num_parts)

    def in_idx(p, s):
        # Clamp so the DMA never reads a fully out-of-range block; the kernel
        # masks the duplicate contribution via its logical block index.
        return (jnp.minimum(p * steps + s, total_blocks - 1), 0)

    kernel = functools.partial(
        _mse_partial_kernel, rows=rows, row_tile=row_tile, steps=steps
    )

    # Real working set: 2 pipeline buffers x (x block + t block) + output slab
    # + scratch slack.  Cap at 40 MiB so v7x (64 MiB physical) keeps headroom.
    blk_bytes = row_tile * LANES * (x2.dtype.itemsize + t2.dtype.itemsize)
    vmem_limit = int(min(40 * 2**20, max(8 * 2**20, 2 * blk_bytes + 2 * 2**20)))

    partials = pl.pallas_call(
        kernel,
        out_shape=jax.ShapeDtypeStruct((num_parts, SUBLANES, LANES), jnp.float32),
        grid_spec=pltpu.PrefetchScalarGridSpec(
            num_scalar_prefetch=0,
            grid=(num_parts, steps),
            in_specs=[
                pl.BlockSpec((row_tile, LANES), in_idx),
                pl.BlockSpec((row_tile, LANES), in_idx),
            ],
            out_specs=pl.BlockSpec((1, SUBLANES, LANES), lambda p, s: (p, 0, 0)),
        ),
        compiler_params=pltpu.CompilerParams(
            dimension_semantics=("parallel", "arbitrary"),
            vmem_limit_bytes=vmem_limit,
        ),
    )(x2, t2)

    return (jnp.sum(partials) / n_true).astype(x.dtype)


def _content_loss_impl(x, target):
    n = int(x.size)
    # Small inputs: a single-block pallas_call is pure launch overhead; the XLA
    # fusion is strictly cheaper.  Non-multiple-of-128 sizes (rare for conv
    # features) also take this path instead of paying a pad/slice copy.
    if n < _SMALL_N_THRESHOLD or (n % LANES) != 0:
        return _mse_reference(x, target)
    return _content_loss_pallas(x, target)


@jax.custom_vjp
def content_loss(x, target):
    """MSE(x, target) with mean reduction (matches nn.MSELoss())."""
    return _content_loss_impl(x, target)


def _content_loss_fwd(x, target):
    return _content_loss_impl(x, target), (x, target)


def _content_loss_bwd(res, g):
    x, target = res
    n = x.size
    diff = x.astype(jnp.float32) - target.astype(jnp.float32)
    gx = (g.astype(jnp.float32) * (2.0 / n)) * diff
    # Target is always detached (stop_gradient'd); a constant-zero cotangent is
    # DCE'd by XLA, so the backward never writes a full target-sized array.
    return gx.astype(x.dtype), jnp.zeros_like(target)


content_loss.defvjp(_content_loss_fwd, _content_loss_bwd)


class ContentLoss:
    """JAX/Pallas equivalent of the PyTorch ContentLoss module."""

    def __init__(self, target):
        # .detach() equivalent: stop gradients through the stored target.
        self.target = jax.lax.stop_gradient(jnp.asarray(target))

    def __call__(self, x):
        return content_loss(x, self.target)


if __name__ == "__main__":
    key = jax.random.PRNGKey(0)
    k1, k2, k3, k4, k5, k6 = jax.random.split(key, 6)

    # --- Module-level test (small conv feature map; fast path + analytic grad).
    x = jax.random.normal(k1, (2, 4, 16, 16), dtype=jnp.float32)
    target = jax.random.normal(k2, (2, 4, 16, 16), dtype=jnp.float32)

    module = ContentLoss(target)
    loss = jax.block_until_ready(module(x))
    ref = jnp.mean((x - target) ** 2)
    assert jnp.allclose(loss, ref, rtol=1e-5, atol=1e-6), (loss, ref)

    gx = jax.block_until_ready(jax.grad(module)(x))
    gref = 2.0 / x.size * (x - target)
    assert jnp.allclose(gx, gref, rtol=1e-5, atol=1e-6)

    # --- Kernel path, single full block (2*4*16*16 = 2048 elems = 16 rows).
    loss_k = jax.block_until_ready(_content_loss_pallas(x, target))
    assert jnp.allclose(loss_k, ref, rtol=1e-5, atol=1e-6), (loss_k, ref)

    # --- Kernel path: multi-block grid, 2-way partition, ragged last block and
    #     a clamped duplicate block (rows=100, row_tile=48 -> 3 blocks, 2 parts).
    xb = jax.random.normal(k3, (1, 8, 40, 40), dtype=jnp.float32)
    tb = jax.random.normal(k4, (1, 8, 40, 40), dtype=jnp.float32)
    loss_b = jax.block_until_ready(_content_loss_pallas(xb, tb, row_tile=48))
    ref_b = jnp.mean((xb - tb) ** 2)
    assert jnp.allclose(loss_b, ref_b, rtol=1e-5, atol=1e-6), (loss_b, ref_b)

    # --- Kernel path: bf16 inputs (packed sublane multiple = 16), ragged block.
    xc = jax.random.normal(k5, (2, 8, 32, 32), dtype=jnp.bfloat16)
    tc = jax.random.normal(k6, (2, 8, 32, 32), dtype=jnp.bfloat16)
    loss_c = jax.block_until_ready(_content_loss_pallas(xc, tc, row_tile=48))
    ref_c = jnp.mean(
        (xc.astype(jnp.float32) - tc.astype(jnp.float32)) ** 2
    )
    assert abs(float(loss_c) - float(ref_c)) <= 1e-2 * abs(float(ref_c)), (
        loss_c, ref_c)

    print("KERNEL_OK")
</pallas_src>

<mosaic_0001>
module attributes {stable_mosaic.version = 11 : i64} {
  func.func @_mse_partial_kernel(%arg0: i32, %arg1: i32, %arg2: memref<16x128xf32, #tpu.memory_space<vmem>>, %arg3: memref<16x128xf32, #tpu.memory_space<vmem>>, %arg4: memref<1x8x128xf32, #tpu.memory_space<vmem>>) attributes {dimension_semantics = [#tpu.dimension_semantics<parallel>, #tpu.dimension_semantics<arbitrary>], iteration_bounds = array<i64: 1, 1>, scalar_prefetch = 0 : i64, scratch_operands = 0 : i64, tpu.core_type = #tpu.core_type<tc>, window_params = [{transform_indices = @transform_0, window_bounds = array<i64: 16, 128>}, {transform_indices = @transform_1, window_bounds = array<i64: 16, 128>}, {transform_indices = @transform_2, window_bounds = array<i64: 1, 8, 128>}]} {
    %c0_i32 = arith.constant 0 : i32
    %0 = arith.cmpi eq, %arg1, %c0_i32 : i32
    %1 = arith.extui %0 : i1 to i32
    %c0_i32_0 = arith.constant 0 : i32
    %2 = arith.cmpi ne, %1, %c0_i32_0 : i32
    scf.if %2 {
      %cst = arith.constant 0.000000e+00 : f32
      %13 = vector.broadcast %cst : f32 to vector<1x8x128xf32>
      %c0 = arith.constant 0 : index
      %c0_5 = arith.constant 0 : index
      %c0_6 = arith.constant 0 : index
      %14 = vector.load %arg4[%c0, %c0_5, %c0_6] : memref<1x8x128xf32, #tpu.memory_space<vmem>>, vector<1x8x128xf32>
      tpu.vector_store %arg4[%c0, %c0_5, %c0_6], %13 {strides = array<i32>} : memref<1x8x128xf32, #tpu.memory_space<vmem>>, vector<1x8x128xf32>,
    } else {
    }
    %c1_i32 = arith.constant 1 : i32
    %3 = arith.muli %arg0, %c1_i32 : i32
    %4 = arith.addi %3, %arg1 : i32
    %c16_i32 = arith.constant 16 : i32
    %5 = arith.muli %4, %c16_i32 : i32
    %c16_i32_1 = arith.constant 16 : i32
    %6 = arith.addi %5, %c16_i32_1 : i32
    %c16_i32_2 = arith.constant 16 : i32
    %7 = arith.cmpi sle, %6, %c16_i32_2 : i32
    %8 = arith.extui %7 : i1 to i32
    %c0_i32_3 = arith.constant 0 : i32
    %9 = arith.cmpi ne, %8, %c0_i32_3 : i32
    scf.if %9 {
      %c0 = arith.constant 0 : index
      %c0_5 = arith.constant 0 : index
      %13 = vector.load %arg2[%c0, %c0_5] : memref<16x128xf32, #tpu.memory_space<vmem>>, vector<16x128xf32>
      %c0_6 = arith.constant 0 : index
      %c0_7 = arith.constant 0 : index
      %14 = vector.load %arg3[%c0_6, %c0_7] : memref<16x128xf32, #tpu.memory_space<vmem>>, vector<16x128xf32>
      %15 = arith.subf %13, %14 : vector<16x128xf32>
      %c0_8 = arith.constant 0 : index
      %c0_9 = arith.constant 0 : index
      %c0_10 = arith.constant 0 : index
      %16 = vector.load %arg4[%c0_8, %c0_9, %c0_10] : memref<1x8x128xf32, #tpu.memory_space<vmem>>, vector<1x8x128xf32>
      %17 = arith.mulf %15, %15 : vector<16x128xf32>
      %18 = vector.shape_cast %17 : vector<16x128xf32> to vector<2x8x128xf32>
      %cst = arith.constant dense<0.000000e+00> : vector<8x128xf32>
      %19 = vector.multi_reduction <add>, %18, %cst [0] : vector<2x8x128xf32> to vector<8x128xf32>
      %20 = vector.shape_cast %19 : vector<8x128xf32> to vector<1x8x128xf32>
      %21 = arith.addf %16, %20 : vector<1x8x128xf32>
      %c0_11 = arith.constant 0 : index
      %c0_12 = arith.constant 0 : index
      %c0_13 = arith.constant 0 : index
      %22 = vector.load %arg4[%c0_11, %c0_12, %c0_13] : memref<1x8x128xf32, #tpu.memory_space<vmem>>, vector<1x8x128xf32>
      tpu.vector_store %arg4[%c0_11, %c0_12, %c0_13], %21 {strides = array<i32>} : memref<1x8x128xf32, #tpu.memory_space<vmem>>, vector<1x8x128xf32>,
    } else {
    }
    %true = arith.constant true
    %10 = arith.xori %7, %true : i1
    %11 = arith.extui %10 : i1 to i32
    %c0_i32_4 = arith.constant 0 : i32
    %12 = arith.cmpi ne, %11, %c0_i32_4 : i32
    scf.if %12 {
      %13 = tpu.iota {dimensions = array<i32: 0>} : vector<16x128xi32>
      %14 = vector.broadcast %5 : i32 to vector<16x128xi32>
      %15 = arith.addi %14, %13 : vector<16x128xi32>
      %c16_i32_5 = arith.constant 16 : i32
      %16 = vector.broadcast %c16_i32_5 : i32 to vector<16x128xi32>
      %17 = arith.cmpi slt, %15, %16 : vector<16x128xi32>
      %c0 = arith.constant 0 : index
      %c0_6 = arith.constant 0 : index
      %18 = vector.load %arg2[%c0, %c0_6] : memref<16x128xf32, #tpu.memory_space<vmem>>, vector<16x128xf32>
      %c0_7 = arith.constant 0 : index
      %c0_8 = arith.constant 0 : index
      %19 = vector.load %arg3[%c0_7, %c0_8] : memref<16x128xf32, #tpu.memory_space<vmem>>, vector<16x128xf32>
      %20 = arith.subf %18, %19 : vector<16x128xf32>
      %cst = arith.constant 0.000000e+00 : f32
      %21 = vector.broadcast %cst : f32 to vector<16x128xf32>
      %22 = arith.select %17, %20, %21 : vector<16x128xi1>, vector<16x128xf32>
      %c0_9 = arith.constant 0 : index
      %c0_10 = arith.constant 0 : index
      %c0_11 = arith.constant 0 : index
      %23 = vector.load %arg4[%c0_9, %c0_10, %c0_11] : memref<1x8x128xf32, #tpu.memory_space<vmem>>, vector<1x8x128xf32>
      %24 = arith.mulf %22, %22 : vector<16x128xf32>
      %25 = vector.shape_cast %24 : vector<16x128xf32> to vector<2x8x128xf32>
      %cst_12 = arith.constant dense<0.000000e+00> : vector<8x128xf32>
      %26 = vector.multi_reduction <add>, %25, %cst_12 [0] : vector<2x8x128xf32> to vector<8x128xf32>
      %27 = vector.shape_cast %26 : vector<8x128xf32> to vector<1x8x128xf32>
      %28 = arith.addf %23, %27 : vector<1x8x128xf32>
      %c0_13 = arith.constant 0 : index
      %c0_14 = arith.constant 0 : index
      %c0_15 = arith.constant 0 : index
      %29 = vector.load %arg4[%c0_13, %c0_14, %c0_15] : memref<1x8x128xf32, #tpu.memory_space<vmem>>, vector<1x8x128xf32>
      tpu.vector_store %arg4[%c0_13, %c0_14, %c0_15], %28 {strides = array<i32>} : memref<1x8x128xf32, #tpu.memory_space<vmem>>, vector<1x8x128xf32>,
    } else {
    }
    return
  }
  func.func @transform_0(%arg0: i32, %arg1: i32) -> (i32, i32) {
    %c1_i32 = arith.constant 1 : i32
    %0 = arith.muli %arg0, %c1_i32 : i32
    %1 = arith.addi %0, %arg1 : i32
    %c0_i32 = arith.constant 0 : i32
    %2 = arith.minsi %1, %c0_i32 : i32
    %c0_i32_0 = arith.constant 0 : i32
    %c0_i32_1 = arith.constant 0 : i32
    return %2, %c0_i32_0 : i32, i32
  }
  func.func @transform_1(%arg0: i32, %arg1: i32) -> (i32, i32) {
    %c1_i32 = arith.constant 1 : i32
    %0 = arith.muli %arg0, %c1_i32 : i32
    %1 = arith.addi %0, %arg1 : i32
    %c0_i32 = arith.constant 0 : i32
    %2 = arith.minsi %1, %c0_i32 : i32
    %c0_i32_0 = arith.constant 0 : i32
    %c0_i32_1 = arith.constant 0 : i32
    return %2, %c0_i32_0 : i32, i32
  }
  func.func @transform_2(%arg0: i32, %arg1: i32) -> (i32, i32, i32) {
    %c0_i32 = arith.constant 0 : i32
    %c0_i32_0 = arith.constant 0 : i32
    %c0_i32_1 = arith.constant 0 : i32
    return %arg0, %c0_i32, %c0_i32_0 : i32, i32, i32
  }
}

</mosaic_0001>

<llo_original>
// kernel: tpu_custom_call.1
$region0: #{tpu_custom_call.1}
  #allocation0 [shape = 'u32[]', space=smem, size = 0x4, offset = 0x4, fixed_abs, tag = 'smem constant byte address 0x4 - core index']
  #allocation1 [shape = 'u32[72,128]{1,0:T(1,128)}', space=vmem, size = 0x9000, scoped, tag = 'internal scratch']
  %s0 = inlined_call_operand.hbm [shape: f32[16,128], index: 0, kind: input, shape index: {}]
  %s1 = inlined_call_operand.hbm [shape: f32[16,128], index: 1, kind: input, shape index: {}]
  %s2 = inlined_call_operand.hbm [shape: f32[1,8,128], index: 2, kind: output, shape index: {}]
  %s3 = sld [smem:[#allocation0]]
  $region38: #{tpu_custom_call.1} parent=0
    _
  %s5 = ssub.s32 1, %s3
  %s6 = scalar_select 0, %s5, %s3
  $region1: #{tpu_custom_call.1} parent=0
    #allocation2 [shape = 'u8[8192]{0}', space=vmem, size = 0x2000, scoped, tag = 'input window, operand 0, single buffered']
    #allocation3 [shape = 's32[1]{0}', space=sflag, size = 0x4, scoped, tag = 'scoped memory for tpu_custom_call.1']
    #allocation4 [shape = 's32[1]{0}', space=sflag, size = 0x4, scoped, tag = 'scoped memory for tpu_custom_call.1']
    #allocation5 [shape = 'u8[8192]{0}', space=vmem, size = 0x2000, scoped, tag = 'input window, operand 1, single buffered']
    #allocation6 [shape = 's32[1]{0}', space=sflag, size = 0x4, scoped, tag = 'scoped memory for tpu_custom_call.1']
    #allocation7 [shape = 'u8[4096]{0}', space=vmem, size = 0x1000, scoped, tag = 'output window, operand 0, single buffered']
    %7 = vsyncpa [#allocation3], 0
    %8 = vsyncpa [#allocation6], 0
    %9 = vsyncpa [#allocation4], 0
    // Predicated region
    $region2: #{tpu_custom_call.1} parent=1 // pred_check
      _
    $region3: #{tpu_custom_call.1} parent=1 // pred_check_branch
      %11 = sbr.rel (0) target = $region5
    $region4: #{tpu_custom_call.1} parent=1 // pred_region
      %s12 = sadd.s32 0, 0
      %p13 = scmp.lt.s32.totalorder %s12, 0
      %s14 = scalar_select %p13, %s12, 0
      %s15 = smul.u32 2, %s14
      %17 = vsyncadd [#allocation3], 0
      %s18 = smul.addr %s15, 8
      %s19 = scalar_lea.hbm %s0, %s18
      %s20 = sshll.u32 %s19, 4
      %s21 = int_to_ptr.hbm [resolvable:$true] %s20
      %s22 = sshll.u32 [#allocation2], 4
      %s23 = int_to_ptr.vmem [resolvable:$true] %s22
      %28 = dma.hbm_to_vmem [thread:$0]  %s21, 256, %s23, [#allocation3], 128, 128, 8
    $region5: #{tpu_custom_call.1} parent=1 // pred_fallthru
      _
    // Predicated region
    $region6: #{tpu_custom_call.1} parent=1 // pred_check
      _
    $region7: #{tpu_custom_call.1} parent=1 // pred_check_branch
      %30 = sbr.rel (0) target = $region9
    $region8: #{tpu_custom_call.1} parent=1 // pred_region
      %s31 = sadd.s32 0, 0
      %p32 = scmp.lt.s32.totalorder %s31, 0
      %s33 = scalar_select %p32, %s31, 0
      %s34 = smul.u32 2, %s33
      %36 = vsyncadd [#allocation6], 0
      %s37 = smul.addr %s34, 8
      %s38 = scalar_lea.hbm %s1, %s37
      %s39 = sshll.u32 %s38, 4
      %s40 = int_to_ptr.hbm [resolvable:$true] %s39
      %s41 = sshll.u32 [#allocation5], 4
      %s42 = int_to_ptr.vmem [resolvable:$true] %s41
      %47 = dma.hbm_to_vmem [thread:$0]  %s40, 256, %s42, [#allocation6], 128, 128, 8
    $region9: #{tpu_custom_call.1} parent=1 // pred_fallthru
      _
    // Predicated region
    $region10: #{tpu_custom_call.1} parent=1 // pred_check
      _
    $region11: #{tpu_custom_call.1} parent=1 // pred_check_branch
      %49 = sbr.rel (0) target = $region13
    $region12: #{tpu_custom_call.1} parent=1 // pred_region
      %51 = dma.done [#allocation3], 256
    $region13: #{tpu_custom_call.1} parent=1 // pred_fallthru
      _
    // Predicated region
    $region14: #{tpu_custom_call.1} parent=1 // pred_check
      _
    $region15: #{tpu_custom_call.1} parent=1 // pred_check_branch
      %53 = sbr.rel (0) target = $region17
    $region16: #{tpu_custom_call.1} parent=1 // pred_region
      %55 = dma.done [#allocation6], 256
    $region17: #{tpu_custom_call.1} parent=1 // pred_fallthru
      _
    %s56 = sadd.s32 0, 0
    %p57 = scmp.lt.s32.totalorder %s56, 0
    %s58 = scalar_select %p57, %s56, 0
    %s59 = smul.u32 2, %s58
    %s60 = sadd.s32 0, 0
    %p61 = scmp.lt.s32.totalorder %s60, 0
    %s62 = scalar_select %p61, %s60, 0
    %s63 = smul.u32 2, %s62
    %p64 = scmp.eq.s32.totalorder 0, 0
    // Predicated region
    $region18: #{tpu_custom_call.1} parent=1 // pred_check
      %p65 = pneg %p64
    $region19: #{tpu_custom_call.1} parent=1 // pred_check_branch
      %67 = sbr.rel (%p65) target = $region21
    $region20: #{tpu_custom_call.1} parent=1 // pred_region
      %68 = vst [vmem:[#allocation7] sm:$0xff] 0.0
    $region21: #{tpu_custom_call.1} parent=1 // pred_fallthru
      _
    %s69 = sadd.s32 0, 0
    %s70 = smul.u32 %s69, 16
    %s71 = sadd.s32 %s70, 16
    %p72 = scmp.le.s32.totalorder %s71, 16
    // Predicated region
    $region22: #{tpu_custom_call.1} parent=1 // pred_check
      %p73 = pneg %p72
    $region23: #{tpu_custom_call.1} parent=1 // pred_check_branch
      %75 = sbr.rel (%p73) target = $region25
    $region24: #{tpu_custom_call.1} parent=1 // pred_region
      %v76 = vld [vmem:[#allocation2] sm:$0xff]
      %v77 = vld [vmem:[#allocation2 + $0x8] sm:$0xff]
      %v78 = vld [vmem:[#allocation5] sm:$0xff]
      %v79 = vld [vmem:[#allocation5 + $0x8] sm:$0xff]
      %v80 = vsub.f32 %v76, %v78
      %v81 = vsub.f32 %v77, %v79
      %v82 = vld [vmem:[#allocation7] sm:$0xff]
      %v83 = vmul.f32 %v80, %v80
      %v84 = vmul.f32 %v81, %v81
      %v85 = vadd.f32 %v83, %v84
      %v86 = vadd.f32 %v82, %v85
      %87 = vst [vmem:[#allocation7] sm:$0xff] %v86
    $region25: #{tpu_custom_call.1} parent=1 // pred_fallthru
      _
    %p88 = scmp.gt.s32.totalorder %s71, 16
    // Predicated region
    $region26: #{tpu_custom_call.1} parent=1 // pred_check
      %p89 = pneg %p88
    $region27: #{tpu_custom_call.1} parent=1 // pred_check_branch
      %91 = sbr.rel (%p89) target = $region29
    $region28: #{tpu_custom_call.1} parent=1 // pred_region
      %v92 = vlaneseq
      %v93 = vshrl.u32 %v92, 7
      %v94 = vadd.s32 %v93, 8
      %v95 = vstv %s70
      %v96 = vadd.s32 %v95, %v93
      %v97 = vadd.s32 %v95, %v94
      %vm98 = vcmp.lt.s32.totalorder %v96, 16
      %vm99 = vcmp.lt.s32.totalorder %v97, 16
      %v100 = vld [vmem:[#allocation2] sm:$0xff]
      %v101 = vld [vmem:[#allocation2 + $0x8] sm:$0xff]
      %v102 = vld [vmem:[#allocation5] sm:$0xff]
      %v103 = vld [vmem:[#allocation5 + $0x8] sm:$0xff]
      %v104 = vsub.f32 %v100, %v102
      %v105 = vsub.f32 %v101, %v103
      %v106 = vsel %vm98, %v104, 0.0
      %v107 = vsel %vm99, %v105, 0.0
      %v108 = vld [vmem:[#allocation7] sm:$0xff]
      %v109 = vmul.f32 %v106, %v106
      %v110 = vmul.f32 %v107, %v107
      %v111 = vadd.f32 %v109, %v110
      %v112 = vadd.f32 %v108, %v111
      %113 = vst [vmem:[#allocation7] sm:$0xff] %v112
    $region29: #{tpu_custom_call.1} parent=1 // pred_fallthru
      _
    // Predicated region
    $region30: #{tpu_custom_call.1} parent=1 // pred_check
      _
    $region31: #{tpu_custom_call.1} parent=1 // pred_check_branch
      %115 = sbr.rel (0) target = $region33
    $region32: #{tpu_custom_call.1} parent=1 // pred_region
      %117 = vsyncadd [#allocation4], 0
      %s119 = sshll.u32 [#allocation7], 4
      %s120 = int_to_ptr.vmem [resolvable:$true] %s119
      %s121 = sshll.u32 %s2, 4
      %s122 = int_to_ptr.hbm [resolvable:$true] %s121
      %124 = dma.vmem_to_hbm [thread:$0]  %s120, 128, %s122, [#allocation4]
    $region33: #{tpu_custom_call.1} parent=1 // pred_fallthru
      _
    // Predicated region
    $region34: #{tpu_custom_call.1} parent=1 // pred_check
      _
    $region35: #{tpu_custom_call.1} parent=1 // pred_check_branch
      %126 = sbr.rel (0) target = $region37
    $region36: #{tpu_custom_call.1} parent=1 // pred_region
      %128 = dma.done [#allocation4], 128
    $region37: #{tpu_custom_call.1} parent=1 // pred_fallthru
      _
    %129 = vsyncpa [#allocation3], 1
    %130 = vsyncpa [#allocation6], 1
    %131 = vsyncpa [#allocation4], 1

</llo_original>
